<compile_context>
chip_gen: v7x
topology: tpu7x:2x2x1
jax: 0.10.0
libtpu: 0.0.40
codegen_flags: <defaults>
</compile_context>

<pallas_src>
import jax
import jax.numpy as jnp
from jax.experimental import pallas as pl
from jax.experimental.pallas import tpu as pltpu


def se_kernel(x_ref, w1t_ref, w2t_ref, o_ref):
    # x_ref / o_ref: (Bt, C, F)   w1t_ref: (C, H)   w2t_ref: (H, C)
    x = x_ref[...]                       # native dtype; no full f32 copy
    f = x.shape[-1]

    # Squeeze: mean over F, accumulated in f32 -> (Bt, C)
    pooled = jnp.sum(x, axis=-1, dtype=jnp.float32) * jnp.float32(1.0 / f)

    # Excitation as batched row matmuls (rows are independent, so the ragged
    # last block's padded rows cannot pollute real rows).
    h = jnp.maximum(
        jnp.dot(pooled, w1t_ref[...], preferred_element_type=jnp.float32), 0.0)
    y = jax.nn.sigmoid(
        jnp.dot(h, w2t_ref[...], preferred_element_type=jnp.float32))  # (Bt, C)

    # Scale: channel-wise gate broadcast over F, multiply in native dtype.
    # (The y relayout to sublanes is O(Bt*C) XLU work, hidden under the DMA.)
    o_ref[...] = x * y.astype(x.dtype)[:, :, None]


# Conservative fallbacks = v7x (smallest VMEM per core, most cores per chip).
_FALLBACK_VMEM_CAP = 64 * 1024 * 1024
_FALLBACK_CORES = 2


def _chip_params():
    """(vmem_capacity_bytes, tensorcores_per_chip) with safe fallbacks."""
    vmem_cap, cores = _FALLBACK_VMEM_CAP, _FALLBACK_CORES
    try:
        info = pltpu.get_tpu_info()
        v = getattr(info, "vmem_capacity_bytes", None)
        if v:
            vmem_cap = int(v)
        for name in ("num_cores", "num_tensorcores", "tensorcore_count",
                     "core_count"):
            c = getattr(info, name, None)
            if c:
                cores = int(c)
                break
    except Exception:
        pass
    return vmem_cap, cores


def _pick_batch_tile(B, C, F, itemsize):
    """Batch-tile size: as big as the VMEM budget allows, but with enough grid
    steps per TensorCore to keep the DMA pipeline in steady state."""
    vmem_cap, cores = _chip_params()

    # 4 tile-sized buffers live at once (in + out, each double-buffered).
    target = min(4 << 20, max(1, vmem_cap // 16))
    per_b = max(1, C * F * itemsize)
    bt = max(1, min(B, target // per_b))          # bytes-target tile

    # ~4 steps per TensorCore for pipelining, but keep the tile >= ~512 KiB.
    min_steps = 4 * max(1, cores)
    bt_for_steps = max(1, -(-B // min_steps))     # ceil(B / min_steps)
    bt_floor = max(1, (512 << 10) // per_b)       # ~512 KiB tile floor
    bt = max(1, min(bt, max(bt_for_steps, bt_floor)))
    bt = min(bt, B)

    return bt, bt * per_b, vmem_cap


def se_layer(x, w1, w2, batch_tile=None):
    """x: (B, C, F), w1: (H, C), w2: (C, H)  ->  (B, C, F).

    Weight shapes follow the PyTorch nn.Linear convention (out, in).
    `batch_tile` overrides the auto-picked tile (testing only).
    """
    B, C, F = x.shape
    H = w1.shape[0]
    assert w1.shape == (H, C) and w2.shape == (C, H)

    # Pre-transpose + cast weights once in the wrapper; they stay VMEM-resident
    # across the whole grid via the constant (0, 0) index_map.
    w1t = w1.T.astype(jnp.float32)       # (C, H)
    w2t = w2.T.astype(jnp.float32)       # (H, C)

    itemsize = x.dtype.itemsize
    bt, tile_bytes, vmem_cap = _pick_batch_tile(B, C, F, itemsize)
    if batch_tile is not None:
        bt = max(1, min(int(batch_tile), B))
        tile_bytes = bt * C * F * itemsize

    # cdiv grid; the last block may be ragged (Pallas pads reads / masks
    # writes, and rows are independent so results stay exact).
    grid = (pl.cdiv(B, bt),)

    # Explicit scoped-VMEM limit: 4 live tile buffers + (double-buffered-ish)
    # weights + slack. Floored at 16 MiB so we never constrain below defaults.
    w_bytes = 2 * C * H * 4
    vmem_limit = int(min(vmem_cap,
                         max(16 << 20, 4 * tile_bytes + 2 * w_bytes + (2 << 20))))

    cost = pl.CostEstimate(
        flops=4 * B * C * H + 2 * B * C * F,   # two tiny matmuls + pool + scale
        transcendentals=B * C,                 # sigmoid
        bytes_accessed=2 * B * C * F * itemsize + 2 * C * H * 4,
    )

    return pl.pallas_call(
        se_kernel,
        out_shape=jax.ShapeDtypeStruct((B, C, F), x.dtype),
        grid_spec=pltpu.PrefetchScalarGridSpec(
            num_scalar_prefetch=0,
            grid=grid,
            in_specs=[
                # (bt, C, F): last two dims equal the full array dims -> legal;
                # F a multiple of 128 gives unmasked, lane-dense loads/stores.
                pl.BlockSpec((bt, C, F), lambda b: (b, 0, 0)),
                pl.BlockSpec((C, H), lambda b: (0, 0)),   # resident weights
                pl.BlockSpec((H, C), lambda b: (0, 0)),   # resident weights
            ],
            out_specs=pl.BlockSpec((bt, C, F), lambda b: (b, 0, 0)),
        ),
        compiler_params=pltpu.CompilerParams(
            dimension_semantics=("parallel",),
            vmem_limit_bytes=vmem_limit,
        ),
        cost_estimate=cost,
    )(x, w1t, w2t)


def se_reference(x, w1, w2):
    """Pure-JAX reference matching the PyTorch module (f32 math)."""
    pooled = jnp.mean(x.astype(jnp.float32), axis=-1)   # (B, C)
    h = jnp.maximum(pooled @ w1.T.astype(jnp.float32), 0.0)
    y = jax.nn.sigmoid(h @ w2.T.astype(jnp.float32))
    return x * y.astype(x.dtype)[:, :, None]


if __name__ == "__main__":
    # Small but lane-friendly shapes: F is a multiple of 128, C a multiple of 8.
    B, C, F = 4, 64, 128
    reduction = 16
    H = C // reduction                                  # 4

    key = jax.random.PRNGKey(0)
    kx, k1, k2, kx2 = jax.random.split(key, 4)

    x = jax.random.normal(kx, (B, C, F), dtype=jnp.float32)
    # PyTorch Linear weight shapes: (out_features, in_features), no bias.
    w1 = jax.random.normal(k1, (H, C), dtype=jnp.float32) * 0.1
    w2 = jax.random.normal(k2, (C, H), dtype=jnp.float32) * 0.1

    out = jax.block_until_ready(se_layer(x, w1, w2))
    ref = se_reference(x, w1, w2)
    assert out.shape == (B, C, F)
    assert jnp.allclose(out, ref, atol=1e-4, rtol=1e-4), "mismatch vs reference"

    # Also exercise the cdiv / ragged-last-block path (B=5 with a forced tile
    # of 2 -> grid of 3 steps, last block half-padded).
    x2 = jax.random.normal(kx2, (5, C, F), dtype=jnp.float32)
    out2 = jax.block_until_ready(se_layer(x2, w1, w2, batch_tile=2))
    ref2 = se_reference(x2, w1, w2)
    assert out2.shape == x2.shape
    assert jnp.allclose(out2, ref2, atol=1e-4, rtol=1e-4), "ragged-grid mismatch"

    print("KERNEL_OK")
</pallas_src>

<mosaic_0001>
module attributes {stable_mosaic.version = 11 : i64} {
  func.func @se_kernel(%arg0: i32, %arg1: memref<4x64x128xf32, #tpu.memory_space<vmem>>, %arg2: memref<64x4xf32, #tpu.memory_space<vmem>>, %arg3: memref<4x64xf32, #tpu.memory_space<vmem>>, %arg4: memref<4x64x128xf32, #tpu.memory_space<vmem>>) attributes {dimension_semantics = [#tpu.dimension_semantics<parallel>], iteration_bounds = array<i64: 1>, scalar_prefetch = 0 : i64, scratch_operands = 0 : i64, tpu.core_type = #tpu.core_type<tc>, window_params = [{transform_indices = @transform_0, window_bounds = array<i64: 4, 64, 128>}, {pipeline_mode = #tpu.pipeline_mode<synchronous>, transform_indices = @transform_1, window_bounds = array<i64: 64, 4>}, {pipeline_mode = #tpu.pipeline_mode<synchronous>, transform_indices = @transform_2, window_bounds = array<i64: 4, 64>}, {transform_indices = @transform_3, window_bounds = array<i64: 4, 64, 128>}]} {
    %c0 = arith.constant 0 : index
    %c0_0 = arith.constant 0 : index
    %c0_1 = arith.constant 0 : index
    %0 = vector.load %arg1[%c0, %c0_0, %c0_1] : memref<4x64x128xf32, #tpu.memory_space<vmem>>, vector<4x64x128xf32>
    %cst = arith.constant dense<0.000000e+00> : vector<4x64xf32>
    %1 = vector.multi_reduction <add>, %0, %cst [2] : vector<4x64x128xf32> to vector<4x64xf32>
    %cst_2 = arith.constant 7.812500e-03 : f32
    %2 = vector.broadcast %cst_2 : f32 to vector<4x64xf32>
    %3 = arith.mulf %1, %2 : vector<4x64xf32>
    %c0_3 = arith.constant 0 : index
    %c0_4 = arith.constant 0 : index
    %4 = vector.load %arg2[%c0_3, %c0_4] : memref<64x4xf32, #tpu.memory_space<vmem>>, vector<64x4xf32>
    %cst_5 = arith.constant dense<0.000000e+00> : vector<4x4xf32>
    %5 = tpu.matmul %3, %4, %cst_5 {dimension_numbers = #tpu.dot_dimension_numbers<[1], [0], [0], [1], [0, 0, 1, 1], [], []>} : vector<4x64xf32>, vector<64x4xf32>, vector<4x4xf32> -> vector<4x4xf32>
    %cst_6 = arith.constant 0.000000e+00 : f32
    %6 = vector.broadcast %cst_6 : f32 to vector<4x4xf32>
    %7 = arith.maximumf %5, %6 : vector<4x4xf32>
    %c0_7 = arith.constant 0 : index
    %c0_8 = arith.constant 0 : index
    %8 = vector.load %arg3[%c0_7, %c0_8] : memref<4x64xf32, #tpu.memory_space<vmem>>, vector<4x64xf32>
    %cst_9 = arith.constant dense<0.000000e+00> : vector<4x64xf32>
    %9 = tpu.matmul %7, %8, %cst_9 {dimension_numbers = #tpu.dot_dimension_numbers<[1], [0], [0], [1], [0, 0, 1, 1], [], []>} : vector<4x4xf32>, vector<4x64xf32>, vector<4x64xf32> -> vector<4x64xf32>
    %10 = arith.negf %9 : vector<4x64xf32>
    %11 = math.exp %10 : vector<4x64xf32>
    %cst_10 = arith.constant 1.000000e+00 : f32
    %12 = vector.broadcast %cst_10 : f32 to vector<4x64xf32>
    %13 = arith.addf %12, %11 : vector<4x64xf32>
    %14 = arith.divf %12, %13 : vector<4x64xf32>
    %15 = vector.shape_cast %14 : vector<4x64xf32> to vector<4x64x1xf32>
    %16 = vector.broadcast %15 : vector<4x64x1xf32> to vector<4x64x128xf32>
    %17 = arith.mulf %0, %16 : vector<4x64x128xf32>
    %c0_11 = arith.constant 0 : index
    %c0_12 = arith.constant 0 : index
    %c0_13 = arith.constant 0 : index
    %18 = vector.load %arg4[%c0_11, %c0_12, %c0_13] : memref<4x64x128xf32, #tpu.memory_space<vmem>>, vector<4x64x128xf32>
    tpu.vector_store %arg4[%c0_11, %c0_12, %c0_13], %17 {strides = array<i32>} : memref<4x64x128xf32, #tpu.memory_space<vmem>>, vector<4x64x128xf32>,
    return
  }
  func.func @transform_0(%arg0: i32) -> (i32, i32, i32) {
    %c0_i32 = arith.constant 0 : i32
    %c0_i32_0 = arith.constant 0 : i32
    %c0_i32_1 = arith.constant 0 : i32
    return %arg0, %c0_i32, %c0_i32_0 : i32, i32, i32
  }
  func.func @transform_1(%arg0: i32) -> (i32, i32) {
    %c0_i32 = arith.constant 0 : i32
    %c0_i32_0 = arith.constant 0 : i32
    %c0_i32_1 = arith.constant 0 : i32
    return %c0_i32, %c0_i32_0 : i32, i32
  }
  func.func @transform_2(%arg0: i32) -> (i32, i32) {
    %c0_i32 = arith.constant 0 : i32
    %c0_i32_0 = arith.constant 0 : i32
    %c0_i32_1 = arith.constant 0 : i32
    return %c0_i32, %c0_i32_0 : i32, i32
  }
  func.func @transform_3(%arg0: i32) -> (i32, i32, i32) {
    %c0_i32 = arith.constant 0 : i32
    %c0_i32_0 = arith.constant 0 : i32
    %c0_i32_1 = arith.constant 0 : i32
    return %arg0, %c0_i32, %c0_i32_0 : i32, i32, i32
  }
}

</mosaic_0001>

<llo_original>
// kernel: tpu_custom_call.1
$region0: #{tpu_custom_call.1}
  #allocation0 [shape = 'u32[]', space=smem, size = 0x4, offset = 0x4, fixed_abs, tag = 'smem constant byte address 0x4 - core index']
  #allocation1 [shape = 'u32[144,128]{1,0:T(1,128)}', space=vmem, size = 0x12000, scoped, tag = 'internal scratch']
  %s0 = inlined_call_operand.hbm [shape: f32[4,64,128], index: 0, kind: input, shape index: {}]
  %s1 = inlined_call_operand.vmem [shape: f32[64,4], index: 1, kind: input, shape index: {}]
  %s2 = inlined_call_operand.vmem [shape: f32[4,64], index: 2, kind: input, shape index: {}]
  %s3 = inlined_call_operand.hbm [shape: f32[4,64,128], index: 3, kind: output, shape index: {}]
  %s4 = sld [smem:[#allocation0]]
  $region26: #{tpu_custom_call.1} parent=0
    _
  %s6 = ssub.s32 1, %s4
  %s7 = scalar_select 0, %s6, %s4
  $region1: #{tpu_custom_call.1} parent=0
    #allocation2 [shape = 'u8[131072]{0}', space=vmem, size = 0x20000, scoped, tag = 'input window, operand 0, single buffered']
    #allocation3 [shape = 's32[1]{0}', space=sflag, size = 0x4, scoped, tag = 'scoped memory for tpu_custom_call.1']
    #allocation4 [shape = 's32[1]{0}', space=sflag, size = 0x4, scoped, tag = 'scoped memory for tpu_custom_call.1']
    #allocation5 [shape = 'u8[131072]{0}', space=vmem, size = 0x20000, scoped, tag = 'output window, operand 0, single buffered']
    %8 = vsyncpa [#allocation3], 0
    %9 = vsyncpa [#allocation4], 0
    // Predicated region
    $region2: #{tpu_custom_call.1} parent=1 // pred_check
      _
    $region3: #{tpu_custom_call.1} parent=1 // pred_check_branch
      %11 = sbr.rel (0) target = $region5
    $region4: #{tpu_custom_call.1} parent=1 // pred_region
      %s13 = ssub.s32 4096, 4096
      %14 = vsyncadd [#allocation3], %s13
      %s15 = sshll.u32 [#allocation2], 4
      %s16 = int_to_ptr.vmem [resolvable:$true] %s15
      %21 = dma.hbm_to_vmem [thread:$0]  %s0, 4096, %s16, [#allocation3], 128, 128, 8
    $region5: #{tpu_custom_call.1} parent=1 // pred_fallthru
      _
    // Predicated region
    $region6: #{tpu_custom_call.1} parent=1 // pred_check
      _
    $region7: #{tpu_custom_call.1} parent=1 // pred_check_branch
      %23 = sbr.rel (0) target = $region9
    $region8: #{tpu_custom_call.1} parent=1 // pred_region
      _
    $region9: #{tpu_custom_call.1} parent=1 // pred_fallthru
      _
    // Predicated region
    $region10: #{tpu_custom_call.1} parent=1 // pred_check
      _
    $region11: #{tpu_custom_call.1} parent=1 // pred_check_branch
      %25 = sbr.rel (0) target = $region13
    $region12: #{tpu_custom_call.1} parent=1 // pred_region
      _
    $region13: #{tpu_custom_call.1} parent=1 // pred_fallthru
      _
    // Predicated region
    $region14: #{tpu_custom_call.1} parent=1 // pred_check
      _
    $region15: #{tpu_custom_call.1} parent=1 // pred_check_branch
      %27 = sbr.rel (0) target = $region17
    $region16: #{tpu_custom_call.1} parent=1 // pred_region
      %28 = dma.done [#allocation3], 4096
    $region17: #{tpu_custom_call.1} parent=1 // pred_fallthru
      _
    %v29 = vld [vmem:[#allocation2] sm:$0xff]
    %v30 = vld [vmem:[#allocation2 + $0x8] sm:$0xff]
    %v31 = vld [vmem:[#allocation2 + $0x10] sm:$0xff]
    %v32 = vld [vmem:[#allocation2 + $0x18] sm:$0xff]
    %v33 = vld [vmem:[#allocation2 + $0x20] sm:$0xff]
    %v34 = vld [vmem:[#allocation2 + $0x28] sm:$0xff]
    %v35 = vld [vmem:[#allocation2 + $0x30] sm:$0xff]
    %v36 = vld [vmem:[#allocation2 + $0x38] sm:$0xff]
    %v37 = vld [vmem:[#allocation2 + $0x40] sm:$0xff]
    %v38 = vld [vmem:[#allocation2 + $0x48] sm:$0xff]
    %v39 = vld [vmem:[#allocation2 + $0x50] sm:$0xff]
    %v40 = vld [vmem:[#allocation2 + $0x58] sm:$0xff]
    %v41 = vld [vmem:[#allocation2 + $0x60] sm:$0xff]
    %v42 = vld [vmem:[#allocation2 + $0x68] sm:$0xff]
    %v43 = vld [vmem:[#allocation2 + $0x70] sm:$0xff]
    %v44 = vld [vmem:[#allocation2 + $0x78] sm:$0xff]
    %v45 = vld [vmem:[#allocation2 + $0x80] sm:$0xff]
    %v46 = vld [vmem:[#allocation2 + $0x88] sm:$0xff]
    %v47 = vld [vmem:[#allocation2 + $0x90] sm:$0xff]
    %v48 = vld [vmem:[#allocation2 + $0x98] sm:$0xff]
    %v49 = vld [vmem:[#allocation2 + $0xa0] sm:$0xff]
    %v50 = vld [vmem:[#allocation2 + $0xa8] sm:$0xff]
    %v51 = vld [vmem:[#allocation2 + $0xb0] sm:$0xff]
    %v52 = vld [vmem:[#allocation2 + $0xb8] sm:$0xff]
    %v53 = vld [vmem:[#allocation2 + $0xc0] sm:$0xff]
    %v54 = vld [vmem:[#allocation2 + $0xc8] sm:$0xff]
    %v55 = vld [vmem:[#allocation2 + $0xd0] sm:$0xff]
    %v56 = vld [vmem:[#allocation2 + $0xd8] sm:$0xff]
    %v57 = vld [vmem:[#allocation2 + $0xe0] sm:$0xff]
    %v58 = vld [vmem:[#allocation2 + $0xe8] sm:$0xff]
    %v59 = vld [vmem:[#allocation2 + $0xf0] sm:$0xff]
    %v60 = vld [vmem:[#allocation2 + $0xf8] sm:$0xff]
    %61 = vadd.xlane.f32.xlu0 %v29
    %v62 = vpop.xlane.xlu0 %61
    %63 = vadd.xlane.f32.xlu0 %v30
    %v64 = vpop.xlane.xlu0 %63
    %65 = vadd.xlane.f32.xlu0 %v31
    %v66 = vpop.xlane.xlu0 %65
    %67 = vadd.xlane.f32.xlu0 %v32
    %v68 = vpop.xlane.xlu0 %67
    %69 = vadd.xlane.f32.xlu0 %v33
    %v70 = vpop.xlane.xlu0 %69
    %71 = vadd.xlane.f32.xlu0 %v34
    %v72 = vpop.xlane.xlu0 %71
    %73 = vadd.xlane.f32.xlu0 %v35
    %v74 = vpop.xlane.xlu0 %73
    %75 = vadd.xlane.f32.xlu0 %v36
    %v76 = vpop.xlane.xlu0 %75
    %77 = vadd.xlane.f32.xlu0 %v37
    %v78 = vpop.xlane.xlu0 %77
    %79 = vadd.xlane.f32.xlu0 %v38
    %v80 = vpop.xlane.xlu0 %79
    %81 = vadd.xlane.f32.xlu0 %v39
    %v82 = vpop.xlane.xlu0 %81
    %83 = vadd.xlane.f32.xlu0 %v40
    %v84 = vpop.xlane.xlu0 %83
    %85 = vadd.xlane.f32.xlu0 %v41
    %v86 = vpop.xlane.xlu0 %85
    %87 = vadd.xlane.f32.xlu0 %v42
    %v88 = vpop.xlane.xlu0 %87
    %89 = vadd.xlane.f32.xlu0 %v43
    %v90 = vpop.xlane.xlu0 %89
    %91 = vadd.xlane.f32.xlu0 %v44
    %v92 = vpop.xlane.xlu0 %91
    %93 = vadd.xlane.f32.xlu0 %v45
    %v94 = vpop.xlane.xlu0 %93
    %95 = vadd.xlane.f32.xlu0 %v46
    %v96 = vpop.xlane.xlu0 %95
    %97 = vadd.xlane.f32.xlu0 %v47
    %v98 = vpop.xlane.xlu0 %97
    %99 = vadd.xlane.f32.xlu0 %v48
    %v100 = vpop.xlane.xlu0 %99
    %101 = vadd.xlane.f32.xlu0 %v49
    %v102 = vpop.xlane.xlu0 %101
    %103 = vadd.xlane.f32.xlu0 %v50
    %v104 = vpop.xlane.xlu0 %103
    %105 = vadd.xlane.f32.xlu0 %v51
    %v106 = vpop.xlane.xlu0 %105
    %107 = vadd.xlane.f32.xlu0 %v52
    %v108 = vpop.xlane.xlu0 %107
    %109 = vadd.xlane.f32.xlu0 %v53
    %v110 = vpop.xlane.xlu0 %109
    %111 = vadd.xlane.f32.xlu0 %v54
    %v112 = vpop.xlane.xlu0 %111
    %113 = vadd.xlane.f32.xlu0 %v55
    %v114 = vpop.xlane.xlu0 %113
    %115 = vadd.xlane.f32.xlu0 %v56
    %v116 = vpop.xlane.xlu0 %115
    %117 = vadd.xlane.f32.xlu0 %v57
    %v118 = vpop.xlane.xlu0 %117
    %119 = vadd.xlane.f32.xlu0 %v58
    %v120 = vpop.xlane.xlu0 %119
    %121 = vadd.xlane.f32.xlu0 %v59
    %v122 = vpop.xlane.xlu0 %121
    %123 = vadd.xlane.f32.xlu0 %v60
    %v124 = vpop.xlane.xlu0 %123
    %v125 = vmul.f32 %v62, 0.0078125
    %v126 = vmul.f32 %v64, 0.0078125
    %v127 = vmul.f32 %v66, 0.0078125
    %v128 = vmul.f32 %v68, 0.0078125
    %v129 = vmul.f32 %v70, 0.0078125
    %v130 = vmul.f32 %v72, 0.0078125
    %v131 = vmul.f32 %v74, 0.0078125
    %v132 = vmul.f32 %v76, 0.0078125
    %v133 = vmul.f32 %v78, 0.0078125
    %v134 = vmul.f32 %v80, 0.0078125
    %v135 = vmul.f32 %v82, 0.0078125
    %v136 = vmul.f32 %v84, 0.0078125
    %v137 = vmul.f32 %v86, 0.0078125
    %v138 = vmul.f32 %v88, 0.0078125
    %v139 = vmul.f32 %v90, 0.0078125
    %v140 = vmul.f32 %v92, 0.0078125
    %v141 = vmul.f32 %v94, 0.0078125
    %v142 = vmul.f32 %v96, 0.0078125
    %v143 = vmul.f32 %v98, 0.0078125
    %v144 = vmul.f32 %v100, 0.0078125
    %v145 = vmul.f32 %v102, 0.0078125
    %v146 = vmul.f32 %v104, 0.0078125
    %v147 = vmul.f32 %v106, 0.0078125
    %v148 = vmul.f32 %v108, 0.0078125
    %v149 = vmul.f32 %v110, 0.0078125
    %v150 = vmul.f32 %v112, 0.0078125
    %v151 = vmul.f32 %v114, 0.0078125
    %v152 = vmul.f32 %v116, 0.0078125
    %v153 = vmul.f32 %v118, 0.0078125
    %v154 = vmul.f32 %v120, 0.0078125
    %v155 = vmul.f32 %v122, 0.0078125
    %v156 = vmul.f32 %v124, 0.0078125
    %v157 = vld [vmem:[%s1] sm:$0xff]
    %v158 = vld [vmem:[%s1 + $0x8] sm:$0xff]
    %v159 = vld [vmem:[%s1 + $0x10] sm:$0xff]
    %v160 = vld [vmem:[%s1 + $0x18] sm:$0xff]
    %v161 = vld [vmem:[%s1 + $0x20] sm:$0xff]
    %v162 = vld [vmem:[%s1 + $0x28] sm:$0xff]
    %v163 = vld [vmem:[%s1 + $0x30] sm:$0xff]
    %v164 = vld [vmem:[%s1 + $0x38] sm:$0xff]
    %v197 = vlaneseq
    %v198 = vand.u32 %v197, 127
    %v199 = vlaneseq
    %v200 = vshrl.u32 %v199, 7
    %v201 = vsub.s32 %v198, %v200
    %v202 = vrot.slane %v125, %v201
    %v203 = vadd.s32 %v198, 4294967288
    %v204 = vlaneseq
    %v205 = vshrl.u32 %v204, 7
    %v206 = vsub.s32 %v203, %v205
    %v207 = vrot.slane %v126, %v206
    %vm208 = vcmask 130112
    %v209 = vsel %vm208, %v207, %v202
    %v210 = vadd.s32 %v198, 4294967280
    %v211 = vlaneseq
    %v212 = vshrl.u32 %v211, 7
    %v213 = vsub.s32 %v210, %v212
    %v214 = vrot.slane %v127, %v213
    %vm215 = vcmask 195712
    %v216 = vsel %vm215, %v214, %v209
    %v217 = vadd.s32 %v198, 4294967272
    %v218 = vlaneseq
    %v219 = vshrl.u32 %v218, 7
    %v220 = vsub.s32 %v217, %v219
    %v221 = vrot.slane %v128, %v220
    %vm222 = vcmask 261312
    %v223 = vsel %vm222, %v221, %v216
    %v224 = vadd.s32 %v198, 4294967264
    %v225 = vlaneseq
    %v226 = vshrl.u32 %v225, 7
    %v227 = vsub.s32 %v224, %v226
    %v228 = vrot.slane %v129, %v227
    %vm229 = vcmask 326912
    %v230 = vsel %vm229, %v228, %v223
    %v231 = vadd.s32 %v198, 4294967256
    %v232 = vlaneseq
    %v233 = vshrl.u32 %v232, 7
    %v234 = vsub.s32 %v231, %v233
    %v235 = vrot.slane %v130, %v234
    %vm236 = vcmask 392512
    %v237 = vsel %vm236, %v235, %v230
    %v238 = vadd.s32 %v198, 4294967248
    %v239 = vlaneseq
    %v240 = vshrl.u32 %v239, 7
    %v241 = vsub.s32 %v238, %v240
    %v242 = vrot.slane %v131, %v241
    %vm243 = vcmask 458112
    %v244 = vsel %vm243, %v242, %v237
    %v245 = vadd.s32 %v198, 4294967240
    %v246 = vlaneseq
    %v247 = vshrl.u32 %v246, 7
    %v248 = vsub.s32 %v245, %v247
    %v249 = vrot.slane %v132, %v248
    %vm250 = vcmask 523712
    %v251 = vsel %vm250, %v249, %v244
    %v252 = vlaneseq
    %v253 = vshrl.u32 %v252, 7
    %v254 = vsub.s32 %v198, %v253
    %v255 = vrot.slane %v133, %v254
    %v256 = vlaneseq
    %v257 = vshrl.u32 %v256, 7
    %v258 = vsub.s32 %v203, %v257
    %v259 = vrot.slane %v134, %v258
    %v260 = vsel %vm208, %v259, %v255
    %v261 = vlaneseq
    %v262 = vshrl.u32 %v261, 7
    %v263 = vsub.s32 %v210, %v262
    %v264 = vrot.slane %v135, %v263
    %v265 = vsel %vm215, %v264, %v260
    %v266 = vlaneseq
    %v267 = vshrl.u32 %v266, 7
    %v268 = vsub.s32 %v217, %v267
    %v269 = vrot.slane %v136, %v268
    %v270 = vsel %vm222, %v269, %v265
    %v271 = vlaneseq
    %v272 = vshrl.u32 %v271, 7
    %v273 = vsub.s32 %v224, %v272
    %v274 = vrot.slane %v137, %v273
    %v275 = vsel %vm229, %v274, %v270
    %v276 = vlaneseq
    %v277 = vshrl.u32 %v276, 7
    %v278 = vsub.s32 %v231, %v277
    %v279 = vrot.slane %v138, %v278
    %v280 = vsel %vm236, %v279, %v275
    %v281 = vlaneseq
    %v282 = vshrl.u32 %v281, 7
    %v283 = vsub.s32 %v238, %v282
    %v284 = vrot.slane %v139, %v283
    %v285 = vsel %vm243, %v284, %v280
    %v286 = vlaneseq
    %v287 = vshrl.u32 %v286, 7
    %v288 = vsub.s32 %v245, %v287
    %v289 = vrot.slane %v140, %v288
    %v290 = vsel %vm250, %v289, %v285
    %v291 = vlaneseq
    %v292 = vshrl.u32 %v291, 7
    %v293 = vsub.s32 %v198, %v292
    %v294 = vrot.slane %v141, %v293
    %v295 = vlaneseq
    %v296 = vshrl.u32 %v295, 7
    %v297 = vsub.s32 %v203, %v296
    %v298 = vrot.slane %v142, %v297
    %v299 = vsel %vm208, %v298, %v294
    %v300 = vlaneseq
    %v301 = vshrl.u32 %v300, 7
    %v302 = vsub.s32 %v210, %v301
    %v303 = vrot.slane %v143, %v302
    %v304 = vsel %vm215, %v303, %v299
    %v305 = vlaneseq
    %v306 = vshrl.u32 %v305, 7
    %v307 = vsub.s32 %v217, %v306
    %v308 = vrot.slane %v144, %v307
    %v309 = vsel %vm222, %v308, %v304
    %v310 = vlaneseq
    %v311 = vshrl.u32 %v310, 7
    %v312 = vsub.s32 %v224, %v311
    %v313 = vrot.slane %v145, %v312
    %v314 = vsel %vm229, %v313, %v309
    %v315 = vlaneseq
    %v316 = vshrl.u32 %v315, 7
    %v317 = vsub.s32 %v231, %v316
    %v318 = vrot.slane %v146, %v317
    %v319 = vsel %vm236, %v318, %v314
    %v320 = vlaneseq
    %v321 = vshrl.u32 %v320, 7
    %v322 = vsub.s32 %v238, %v321
    %v323 = vrot.slane %v147, %v322
    %v324 = vsel %vm243, %v323, %v319
    %v325 = vlaneseq
    %v326 = vshrl.u32 %v325, 7
    %v327 = vsub.s32 %v245, %v326
    %v328 = vrot.slane %v148, %v327
    %v329 = vsel %vm250, %v328, %v324
    %v330 = vlaneseq
    %v331 = vshrl.u32 %v330, 7
    %v332 = vsub.s32 %v198, %v331
    %v333 = vrot.slane %v149, %v332
    %v334 = vlaneseq
    %v335 = vshrl.u32 %v334, 7
    %v336 = vsub.s32 %v203, %v335
    %v337 = vrot.slane %v150, %v336
    %v338 = vsel %vm208, %v337, %v333
    %v339 = vlaneseq
    %v340 = vshrl.u32 %v339, 7
    %v341 = vsub.s32 %v210, %v340
    %v342 = vrot.slane %v151, %v341
    %v343 = vsel %vm215, %v342, %v338
    %v344 = vlaneseq
    %v345 = vshrl.u32 %v344, 7
    %v346 = vsub.s32 %v217, %v345
    %v347 = vrot.slane %v152, %v346
    %v348 = vsel %vm222, %v347, %v343
    %v349 = vlaneseq
    %v350 = vshrl.u32 %v349, 7
    %v351 = vsub.s32 %v224, %v350
    %v352 = vrot.slane %v153, %v351
    %v353 = vsel %vm229, %v352, %v348
    %v354 = vlaneseq
    %v355 = vshrl.u32 %v354, 7
    %v356 = vsub.s32 %v231, %v355
    %v357 = vrot.slane %v154, %v356
    %v358 = vsel %vm236, %v357, %v353
    %v359 = vlaneseq
    %v360 = vshrl.u32 %v359, 7
    %v361 = vsub.s32 %v238, %v360
    %v362 = vrot.slane %v155, %v361
    %v363 = vsel %vm243, %v362, %v358
    %v364 = vlaneseq
    %v365 = vshrl.u32 %v364, 7
    %v366 = vsub.s32 %v245, %v365
    %v367 = vrot.slane %v156, %v366
    %v368 = vsel %vm250, %v367, %v363
    %vm369 = vcmask 1041409
    %v370 = vsel %vm369, %v290, %v251
    %vm371 = vcmask 1042434
    %v372 = vsel %vm371, %v329, %v370
    %vm373 = vcmask 1043459
    %v374 = vsel %vm373, %v368, %v372
    %vm375 = vcmask 523264
    %v376 = vsel %vm375, %v374, 0
    %378 = vmatprep.subr.mxu0 0.0
    %379 = vmatpush1.msra.mxu0 %v157
    %380 = vmatprep.subr.mxu0 0.0
    %381 = vmatpush1.msra.mxu0 %v158
    %382 = vmatprep.subr.mxu0 0.0
    %383 = vmatpush1.msra.mxu0 %v159
    %384 = vmatprep.subr.mxu0 0.0
    %385 = vmatpush1.msra.mxu0 %v160
    %386 = vmatprep.subr.mxu0 0.0
    %387 = vmatpush1.msra.mxu0 %v161
    %388 = vmatprep.subr.mxu0 0.0
    %389 = vmatpush1.msra.mxu0 %v162
    %390 = vmatprep.subr.mxu0 0.0
    %391 = vmatpush1.msra.mxu0 %v163
    %392 = vmatprep.subr.mxu0 0.0
    %393 = vmatpush1.msra.mxu0 %v164
    %394 = vmatprep.subr.mxu0 0.0
    %395 = vmatpush1.msra.mxu0 0.0
    %396 = vmatprep.subr.mxu0 0.0
    %397 = vmatpush1.msra.mxu0 0.0
    %398 = vmatprep.subr.mxu0 0.0
    %399 = vmatpush1.msra.mxu0 0.0
    %400 = vmatprep.subr.mxu0 0.0
    %401 = vmatpush1.msra.mxu0 0.0
    %402 = vmatprep.subr.mxu0 0.0
    %403 = vmatpush1.msra.mxu0 0.0
    %404 = vmatprep.subr.mxu0 0.0
    %405 = vmatpush1.msra.mxu0 0.0
    %406 = vmatprep.subr.mxu0 0.0
    %407 = vmatpush1.msra.mxu0 0.0
    %408 = vmatprep.subr.mxu0 0.0
    %409 = vmatpush1.msra.mxu0 0.0
    %410 = vmatprep.subr.mxu0 0.0
    %411 = vmatpush1.msra.mxu0 0.0
    %412 = vmatprep.subr.mxu0 0.0
    %413 = vmatpush1.msra.mxu0 0.0
    %414 = vmatprep.subr.mxu0 0.0
    %415 = vmatpush1.msra.mxu0 0.0
    %416 = vmatprep.subr.mxu0 0.0
    %417 = vmatpush1.msra.mxu0 0.0
    %418 = vmatprep.subr.mxu0 0.0
    %419 = vmatpush1.msra.mxu0 0.0
    %420 = vmatprep.subr.mxu0 0.0
    %421 = vmatpush1.msra.mxu0 0.0
    %422 = vmatprep.subr.mxu0 0.0
    %423 = vmatpush1.msra.mxu0 0.0
    %424 = vmatprep.subr.mxu0 0.0
    %425 = vmatpush1.msra.mxu0 0.0
    %426 = vmatprep.subr.mxu0 0.0
    %427 = vmatpush1.msra.mxu0 0.0
    %428 = vmatprep.subr.mxu0 0.0
    %429 = vmatpush1.msra.mxu0 0.0
    %430 = vmatprep.subr.mxu0 0.0
    %431 = vmatpush1.msra.mxu0 0.0
    %432 = vmatprep.subr.mxu0 0.0
    %433 = vmatpush1.msra.mxu0 0.0
    %434 = vmatprep.subr.mxu0 0.0
    %435 = vmatpush1.msra.mxu0 0.0
    %436 = vmatprep.subr.mxu0 0.0
    %437 = vmatpush1.msra.mxu0 0.0
    %438 = vmatprep.subr.mxu0 0.0
    %439 = vmatpush1.msra.mxu0 0.0
    %440 = vmatprep.subr.mxu0 0.0
    %441 = vmatpush1.msra.mxu0 0.0
    %442 = vmatprep.mubr.f32.mxu0 0.0
    %443 = vmatmul.mubr.f32.gmra.mrb[0].mxu0 %v376
    %v444 = vpop.f32.mrb[0].mxu0
    %v445 = vadd.f32 0.0, %v444
    %v446 = vpop.f32.mrb[0].mxu0
    %447 = vdwg.mxu0
    %v448 = vmax.f32 %v445, 0.0
    %v449 = vld [vmem:[%s2] sm:$0xf]
    %vm450 = vcmask 31744
    %v452 = vsel %vm450, %v448, 0
    %vm454 = vcmask 1043456
    %v456 = vsel %vm454, %v449, 0
    %458 = vmatprep.subr.mxu0 0.0
    %459 = vmatpush1.msra.mxu0 %v456
    %460 = vmatprep.subr.mxu0 0.0
    %461 = vmatpush1.msra.mxu0 0.0
    %462 = vmatprep.subr.mxu0 0.0
    %463 = vmatpush1.msra.mxu0 0.0
    %464 = vmatprep.subr.mxu0 0.0
    %465 = vmatpush1.msra.mxu0 0.0
    %466 = vmatprep.subr.mxu0 0.0
    %467 = vmatpush1.msra.mxu0 0.0
    %468 = vmatprep.subr.mxu0 0.0
    %469 = vmatpush1.msra.mxu0 0.0
    %470 = vmatprep.subr.mxu0 0.0
    %471 = vmatpush1.msra.mxu0 0.0
    %472 = vmatprep.subr.mxu0 0.0
    %473 = vmatpush1.msra.mxu0 0.0
    %474 = vmatprep.subr.mxu0 0.0
    %475 = vmatpush1.msra.mxu0 0.0
    %476 = vmatprep.subr.mxu0 0.0
    %477 = vmatpush1.msra.mxu0 0.0
    %478 = vmatprep.subr.mxu0 0.0
    %479 = vmatpush1.msra.mxu0 0.0
    %480 = vmatprep.subr.mxu0 0.0
    %481 = vmatpush1.msra.mxu0 0.0
    %482 = vmatprep.subr.mxu0 0.0
    %483 = vmatpush1.msra.mxu0 0.0
    %484 = vmatprep.subr.mxu0 0.0
    %485 = vmatpush1.msra.mxu0 0.0
    %486 = vmatprep.subr.mxu0 0.0
    %487 = vmatpush1.msra.mxu0 0.0
    %488 = vmatprep.subr.mxu0 0.0
    %489 = vmatpush1.msra.mxu0 0.0
    %490 = vmatprep.subr.mxu0 0.0
    %491 = vmatpush1.msra.mxu0 0.0
    %492 = vmatprep.subr.mxu0 0.0
    %493 = vmatpush1.msra.mxu0 0.0
    %494 = vmatprep.subr.mxu0 0.0
    %495 = vmatpush1.msra.mxu0 0.0
    %496 = vmatprep.subr.mxu0 0.0
    %497 = vmatpush1.msra.mxu0 0.0
    %498 = vmatprep.subr.mxu0 0.0
    %499 = vmatpush1.msra.mxu0 0.0
    %500 = vmatprep.subr.mxu0 0.0
    %501 = vmatpush1.msra.mxu0 0.0
    %502 = vmatprep.subr.mxu0 0.0
    %503 = vmatpush1.msra.mxu0 0.0
    %504 = vmatprep.subr.mxu0 0.0
    %505 = vmatpush1.msra.mxu0 0.0
    %506 = vmatprep.subr.mxu0 0.0
    %507 = vmatpush1.msra.mxu0 0.0
    %508 = vmatprep.subr.mxu0 0.0
    %509 = vmatpush1.msra.mxu0 0.0
    %510 = vmatprep.subr.mxu0 0.0
    %511 = vmatpush1.msra.mxu0 0.0
    %512 = vmatprep.subr.mxu0 0.0
    %513 = vmatpush1.msra.mxu0 0.0
    %514 = vmatprep.subr.mxu0 0.0
    %515 = vmatpush1.msra.mxu0 0.0
    %516 = vmatprep.subr.mxu0 0.0
    %517 = vmatpush1.msra.mxu0 0.0
    %518 = vmatprep.subr.mxu0 0.0
    %519 = vmatpush1.msra.mxu0 0.0
    %520 = vmatprep.subr.mxu0 0.0
    %521 = vmatpush1.msra.mxu0 0.0
    %522 = vmatprep.mubr.f32.mxu0 0.0
    %523 = vmatmul.mubr.f32.gmra.mrb[0].mxu0 %v452
    %v524 = vpop.f32.mrb[0].mxu0
    %v525 = vadd.f32 0.0, %v524
    %v526 = vpop.f32.mrb[0].mxu0
    %527 = vdwg.mxu0
    %v528 = vxor.u32 %v525, 2147483648
    %v529 = vmul.f32 %v528, 1.442695
    %v530 = vpow.pop %v529
    %v531 = vadd.f32 %v530, 1.0
    %v532 = vrcp.pop %v531
    %v533 = vmul.f32 1.0, %v532
    %v534 = vlaneseq
    %v535 = vshrl.u32 %v534, 7
    %v536 = vsub.s32 0, %v535
    %v537 = vrot.slane %v533, %v536
    %539 = vbcast.lane.b32.xlu0 %v537, 256
    %v540 = vpop.permute.xlu0 %539
    %s542 = sor.u32 256, 8
    %543 = vbcast.lane.b32.xlu0 %v537, %s542
    %v544 = vpop.permute.xlu0 %543
    %s546 = sor.u32 256, 16
    %547 = vbcast.lane.b32.xlu0 %v537, %s546
    %v548 = vpop.permute.xlu0 %547
    %s550 = sor.u32 256, 24
    %551 = vbcast.lane.b32.xlu0 %v537, %s550
    %v552 = vpop.permute.xlu0 %551
    %s554 = sor.u32 256, 32
    %555 = vbcast.lane.b32.xlu0 %v537, %s554
    %v556 = vpop.permute.xlu0 %555
    %s558 = sor.u32 256, 40
    %559 = vbcast.lane.b32.xlu0 %v537, %s558
    %v560 = vpop.permute.xlu0 %559
    %s562 = sor.u32 256, 48
    %563 = vbcast.lane.b32.xlu0 %v537, %s562
    %v564 = vpop.permute.xlu0 %563
    %s566 = sor.u32 256, 56
    %567 = vbcast.lane.b32.xlu0 %v537, %s566
    %v568 = vpop.permute.xlu0 %567
    %v569 = vlaneseq
    %v570 = vshrl.u32 %v569, 7
    %v571 = vsub.s32 1, %v570
    %v572 = vrot.slane %v533, %v571
    %574 = vbcast.lane.b32.xlu0 %v572, 256
    %v575 = vpop.permute.xlu0 %574
    %s577 = sor.u32 256, 8
    %578 = vbcast.lane.b32.xlu0 %v572, %s577
    %v579 = vpop.permute.xlu0 %578
    %s581 = sor.u32 256, 16
    %582 = vbcast.lane.b32.xlu0 %v572, %s581
    %v583 = vpop.permute.xlu0 %582
    %s585 = sor.u32 256, 24
    %586 = vbcast.lane.b32.xlu0 %v572, %s585
    %v587 = vpop.permute.xlu0 %586
    %s589 = sor.u32 256, 32
    %590 = vbcast.lane.b32.xlu0 %v572, %s589
    %v591 = vpop.permute.xlu0 %590
    %s593 = sor.u32 256, 40
    %594 = vbcast.lane.b32.xlu0 %v572, %s593
    %v595 = vpop.permute.xlu0 %594
    %s597 = sor.u32 256, 48
    %598 = vbcast.lane.b32.xlu0 %v572, %s597
    %v599 = vpop.permute.xlu0 %598
    %s601 = sor.u32 256, 56
    %602 = vbcast.lane.b32.xlu0 %v572, %s601
    %v603 = vpop.permute.xlu0 %602
    %v604 = vlaneseq
    %v605 = vshrl.u32 %v604, 7
    %v606 = vsub.s32 2, %v605
    %v607 = vrot.slane %v533, %v606
    %609 = vbcast.lane.b32.xlu0 %v607, 256
    %v610 = vpop.permute.xlu0 %609
    %s612 = sor.u32 256, 8
    %613 = vbcast.lane.b32.xlu0 %v607, %s612
    %v614 = vpop.permute.xlu0 %613
    %s616 = sor.u32 256, 16
    %617 = vbcast.lane.b32.xlu0 %v607, %s616
    %v618 = vpop.permute.xlu0 %617
    %s620 = sor.u32 256, 24
    %621 = vbcast.lane.b32.xlu0 %v607, %s620
    %v622 = vpop.permute.xlu0 %621
    %s624 = sor.u32 256, 32
    %625 = vbcast.lane.b32.xlu0 %v607, %s624
    %v626 = vpop.permute.xlu0 %625
    %s628 = sor.u32 256, 40
    %629 = vbcast.lane.b32.xlu0 %v607, %s628
    %v630 = vpop.permute.xlu0 %629
    %s632 = sor.u32 256, 48
    %633 = vbcast.lane.b32.xlu0 %v607, %s632
    %v634 = vpop.permute.xlu0 %633
    %s636 = sor.u32 256, 56
    %637 = vbcast.lane.b32.xlu0 %v607, %s636
    %v638 = vpop.permute.xlu0 %637
    %v639 = vlaneseq
    %v640 = vshrl.u32 %v639, 7
    %v641 = vsub.s32 3, %v640
    %v642 = vrot.slane %v533, %v641
    %644 = vbcast.lane.b32.xlu0 %v642, 256
    %v645 = vpop.permute.xlu0 %644
    %s647 = sor.u32 256, 8
    %648 = vbcast.lane.b32.xlu0 %v642, %s647
    %v649 = vpop.permute.xlu0 %648
    %s651 = sor.u32 256, 16
    %652 = vbcast.lane.b32.xlu0 %v642, %s651
    %v653 = vpop.permute.xlu0 %652
    %s655 = sor.u32 256, 24
    %656 = vbcast.lane.b32.xlu0 %v642, %s655
    %v657 = vpop.permute.xlu0 %656
    %s659 = sor.u32 256, 32
    %660 = vbcast.lane.b32.xlu0 %v642, %s659
    %v661 = vpop.permute.xlu0 %660
    %s663 = sor.u32 256, 40
    %664 = vbcast.lane.b32.xlu0 %v642, %s663
    %v665 = vpop.permute.xlu0 %664
    %s667 = sor.u32 256, 48
    %668 = vbcast.lane.b32.xlu0 %v642, %s667
    %v669 = vpop.permute.xlu0 %668
    %s671 = sor.u32 256, 56
    %672 = vbcast.lane.b32.xlu0 %v642, %s671
    %v673 = vpop.permute.xlu0 %672
    %v674 = vmul.f32 %v29, %v540
    %v675 = vmul.f32 %v30, %v544
    %v676 = vmul.f32 %v31, %v548
    %v677 = vmul.f32 %v32, %v552
    %v678 = vmul.f32 %v33, %v556
    %v679 = vmul.f32 %v34, %v560
    %v680 = vmul.f32 %v35, %v564
    %v681 = vmul.f32 %v36, %v568
    %v682 = vmul.f32 %v37, %v575
    %v683 = vmul.f32 %v38, %v579
    %v684 = vmul.f32 %v39, %v583
    %v685 = vmul.f32 %v40, %v587
    %v686 = vmul.f32 %v41, %v591
    %v687 = vmul.f32 %v42, %v595
    %v688 = vmul.f32 %v43, %v599
    %v689 = vmul.f32 %v44, %v603
    %v690 = vmul.f32 %v45, %v610
    %v691 = vmul.f32 %v46, %v614
    %v692 = vmul.f32 %v47, %v618
    %v693 = vmul.f32 %v48, %v622
    %v694 = vmul.f32 %v49, %v626
    %v695 = vmul.f32 %v50, %v630
    %v696 = vmul.f32 %v51, %v634
    %v697 = vmul.f32 %v52, %v638
    %v698 = vmul.f32 %v53, %v645
    %v699 = vmul.f32 %v54, %v649
    %v700 = vmul.f32 %v55, %v653
    %v701 = vmul.f32 %v56, %v657
    %v702 = vmul.f32 %v57, %v661
    %v703 = vmul.f32 %v58, %v665
    %v704 = vmul.f32 %v59, %v669
    %v705 = vmul.f32 %v60, %v673
    %706 = vst [vmem:[#allocation5] sm:$0xff] %v674
    %707 = vst [vmem:[#allocation5 + $0x8] sm:$0xff] %v675
    %708 = vst [vmem:[#allocation5 + $0x10] sm:$0xff] %v676
    %709 = vst [vmem:[#allocation5 + $0x18] sm:$0xff] %v677
    %710 = vst [vmem:[#allocation5 + $0x20] sm:$0xff] %v678
    %711 = vst [vmem:[#allocation5 + $0x28] sm:$0xff] %v679
    %712 = vst [vmem:[#allocation5 + $0x30] sm:$0xff] %v680
    %713 = vst [vmem:[#allocation5 + $0x38] sm:$0xff] %v681
    %714 = vst [vmem:[#allocation5 + $0x40] sm:$0xff] %v682
    %715 = vst [vmem:[#allocation5 + $0x48] sm:$0xff] %v683
    %716 = vst [vmem:[#allocation5 + $0x50] sm:$0xff] %v684
    %717 = vst [vmem:[#allocation5 + $0x58] sm:$0xff] %v685
    %718 = vst [vmem:[#allocation5 + $0x60] sm:$0xff] %v686
    %719 = vst [vmem:[#allocation5 + $0x68] sm:$0xff] %v687
    %720 = vst [vmem:[#allocation5 + $0x70] sm:$0xff] %v688
    %721 = vst [vmem:[#allocation5 + $0x78] sm:$0xff] %v689
    %722 = vst [vmem:[#allocation5 + $0x80] sm:$0xff] %v690
    %723 = vst [vmem:[#allocation5 + $0x88] sm:$0xff] %v691
    %724 = vst [vmem:[#allocation5 + $0x90] sm:$0xff] %v692
    %725 = vst [vmem:[#allocation5 + $0x98] sm:$0xff] %v693
    %726 = vst [vmem:[#allocation5 + $0xa0] sm:$0xff] %v694
    %727 = vst [vmem:[#allocation5 + $0xa8] sm:$0xff] %v695
    %728 = vst [vmem:[#allocation5 + $0xb0] sm:$0xff] %v696
    %729 = vst [vmem:[#allocation5 + $0xb8] sm:$0xff] %v697
    %730 = vst [vmem:[#allocation5 + $0xc0] sm:$0xff] %v698
    %731 = vst [vmem:[#allocation5 + $0xc8] sm:$0xff] %v699
    %732 = vst [vmem:[#allocation5 + $0xd0] sm:$0xff] %v700
    %733 = vst [vmem:[#allocation5 + $0xd8] sm:$0xff] %v701
    %734 = vst [vmem:[#allocation5 + $0xe0] sm:$0xff] %v702
    %735 = vst [vmem:[#allocation5 + $0xe8] sm:$0xff] %v703
    %736 = vst [vmem:[#allocation5 + $0xf0] sm:$0xff] %v704
    %737 = vst [vmem:[#allocation5 + $0xf8] sm:$0xff] %v705
    // Predicated region
    $region18: #{tpu_custom_call.1} parent=1 // pred_check
      _
    $region19: #{tpu_custom_call.1} parent=1 // pred_check_branch
      %739 = sbr.rel (0) target = $region21
    $region20: #{tpu_custom_call.1} parent=1 // pred_region
      %s741 = ssub.s32 4096, 4096
      %742 = vsyncadd [#allocation4], %s741
      %s743 = sshll.u32 [#allocation5], 4
      %s744 = int_to_ptr.vmem [resolvable:$true] %s743
      %749 = dma.vmem_to_hbm [thread:$0]  %s744, 4096, %s3, [#allocation4], 128, 128, 8
    $region21: #{tpu_custom_call.1} parent=1 // pred_fallthru
      _
    // Predicated region
    $region22: #{tpu_custom_call.1} parent=1 // pred_check
      _
    $region23: #{tpu_custom_call.1} parent=1 // pred_check_branch
      %751 = sbr.rel (0) target = $region25
    $region24: #{tpu_custom_call.1} parent=1 // pred_region
      %752 = dma.done [#allocation4], 4096
    $region25: #{tpu_custom_call.1} parent=1 // pred_fallthru
      _
    %753 = vsyncpa [#allocation3], 1
    %754 = vsyncpa [#allocation4], 1

</llo_original>
